<compile_context>
chip_gen: v7x
topology: tpu7x:2x2x1
jax: 0.10.0
libtpu: 0.0.40
codegen_flags: <defaults>
</compile_context>

<pallas_src>
import functools

import jax
import jax.numpy as jnp
from jax.experimental import pallas as pl
from jax.experimental.pallas import tpu as pltpu


def _cdiv(a, b):
    return (a + b - 1) // b


def _round_up(a, b):
    return _cdiv(a, b) * b


_VMEM_BUDGET = 24 * 1024 * 1024        # conservative across v5e / v6e / v7x
_DEFAULT_BLOCK_BYTES = 2 * 1024 * 1024  # ~2 MiB blocks, 4 double-buffers ~8 MiB
_VMEM_LIMIT = 32 * 1024 * 1024


# --------------------------- fused single-pass path -------------------------

def _ca_fused_kernel(x_ref, o_ref, *, hw):
    # x_ref / o_ref: (tile_rows, hw) block, one row per (n, c).
    x = x_ref[...]
    x32 = x.astype(jnp.float32)                       # f32 reductions (bf16-safe)
    row_max = jnp.max(x32, axis=1, keepdims=True)     # MaxPool2d((h, w))
    row_sum = jnp.sum(x32, axis=1, keepdims=True)     # AvgPool2d((h, w)) * hw
    scale = jax.nn.sigmoid(row_max + row_sum * (1.0 / float(hw)))
    # Final multiply in the input dtype: no full-block f32 temp for the output.
    o_ref[...] = x * scale.astype(x.dtype)


# ---------------------- two-pass fallback (very large H*W) ------------------

def _ca_reduce_kernel(x_ref, s_ref, max_acc, sum_acc, *, hw, tile_hw, mask_tail):
    k = pl.program_id(1)

    @pl.when(k == 0)
    def _():
        max_acc[...] = jnp.full(max_acc.shape, -jnp.inf, dtype=max_acc.dtype)
        sum_acc[...] = jnp.zeros(sum_acc.shape, dtype=sum_acc.dtype)

    x32 = x_ref[...].astype(jnp.float32)
    if mask_tail:
        # Last spatial chunk is ragged: lanes beyond the true H*W hold OOB
        # garbage, so mask them (-inf for max, 0 for sum).
        lane = jax.lax.broadcasted_iota(jnp.int32, x32.shape, 1) + k * tile_hw
        valid = lane < hw
        x_max = jnp.where(valid, x32, -jnp.inf)
        x_sum = jnp.where(valid, x32, 0.0)
    else:
        x_max = x32
        x_sum = x32

    max_acc[...] = jnp.maximum(max_acc[...], jnp.max(x_max, axis=1, keepdims=True))
    sum_acc[...] = sum_acc[...] + jnp.sum(x_sum, axis=1, keepdims=True)

    @pl.when(k == pl.num_programs(1) - 1)
    def _():
        s_ref[...] = jax.nn.sigmoid(max_acc[...] + sum_acc[...] * (1.0 / float(hw)))


def _ca_apply_kernel(x_ref, s_ref, o_ref):
    o_ref[...] = x_ref[...] * s_ref[...].astype(o_ref.dtype)


# --------------------------------- wrapper -----------------------------------

@functools.partial(
    jax.jit, static_argnames=("tile_rows", "tile_hw", "block_bytes", "force_split"))
def channel_attention(x, *, tile_rows=None, tile_hw=None, block_bytes=None,
                      force_split=False):
    """ChannelAttention forward. x: (N, C, H, W) float array -> same shape."""
    n, c, h, w = x.shape
    nc = n * c
    hw = h * w
    itemsize = jnp.dtype(x.dtype).itemsize
    # Sublane multiple for the (8,128) block constraint / dtype packing.
    sublane = max(8, 32 // itemsize)
    target = _DEFAULT_BLOCK_BYTES if block_bytes is None else int(block_bytes)

    x2d = x.reshape(nc, hw)                 # pure relabel; no data movement
    row_bytes = hw * itemsize
    min_rows = nc if nc <= sublane else sublane
    use_split = force_split or (4 * min_rows * row_bytes > _VMEM_BUDGET)

    if not use_split:
        # --------- single-pass: one full spatial row per block row ----------
        if nc <= sublane:
            t_rows = nc                      # full dim -> exempt from 8-divisibility
        else:
            if tile_rows is None:
                cap_target = target // row_bytes            # ~2 MiB blocks
                cap_vmem = _VMEM_BUDGET // (4 * row_bytes)  # clamp to VMEM budget
                rows_for_steps = _cdiv(nc, 8)               # aim for >= ~8 grid steps
                rows = min(cap_target, cap_vmem, rows_for_steps)
            else:
                cap_vmem = _VMEM_BUDGET // (4 * row_bytes)
                rows = min(int(tile_rows), max(sublane, cap_vmem))
            rows = max(sublane, (rows // sublane) * sublane)
            t_rows = min(rows, _round_up(nc, sublane))

        grid = (_cdiv(nc, t_rows),)          # ragged last block: OOB reads are
                                             # per-row garbage, OOB writes dropped
        kernel = functools.partial(_ca_fused_kernel, hw=hw)
        out2d = pl.pallas_call(
            kernel,
            out_shape=jax.ShapeDtypeStruct((nc, hw), x.dtype),
            grid_spec=pltpu.PrefetchScalarGridSpec(
                num_scalar_prefetch=0,
                grid=grid,
                in_specs=[pl.BlockSpec((t_rows, hw), lambda i: (i, 0))],
                out_specs=pl.BlockSpec((t_rows, hw), lambda i: (i, 0)),
            ),
            compiler_params=pltpu.CompilerParams(
                dimension_semantics=("parallel",),
                vmem_limit_bytes=_VMEM_LIMIT,
            ),
            cost_estimate=pl.CostEstimate(
                flops=3 * nc * hw,
                transcendentals=nc,
                bytes_accessed=2 * nc * hw * itemsize,
            ),
        )(x2d)
        return out2d.reshape(n, c, h, w)

    # --------- two-pass fallback: reduce over spatial chunks, then apply -----
    rows = min_rows
    if tile_hw is None:
        thw = max(128, (target // (rows * itemsize)) // 128 * 128)
    else:
        thw = max(128, (int(tile_hw) // 128) * 128)
    thw = min(thw, _round_up(hw, 128))
    grid = (_cdiv(nc, rows), _cdiv(hw, thw))
    mask_tail = (hw % thw) != 0

    reduce_kernel = functools.partial(
        _ca_reduce_kernel, hw=hw, tile_hw=thw, mask_tail=mask_tail)
    scale = pl.pallas_call(
        reduce_kernel,
        out_shape=jax.ShapeDtypeStruct((nc, 1), jnp.float32),
        grid_spec=pltpu.PrefetchScalarGridSpec(
            num_scalar_prefetch=0,
            grid=grid,
            in_specs=[pl.BlockSpec((rows, thw), lambda i, k: (i, k))],
            out_specs=pl.BlockSpec((rows, 1), lambda i, k: (i, 0)),
            scratch_shapes=[pltpu.VMEM((rows, 1), jnp.float32),
                            pltpu.VMEM((rows, 1), jnp.float32)],
        ),
        compiler_params=pltpu.CompilerParams(
            dimension_semantics=("parallel", "arbitrary"),
            vmem_limit_bytes=_VMEM_LIMIT,
        ),
        cost_estimate=pl.CostEstimate(
            flops=2 * nc * hw,
            transcendentals=nc,
            bytes_accessed=nc * hw * itemsize,
        ),
    )(x2d)

    out2d = pl.pallas_call(
        _ca_apply_kernel,
        out_shape=jax.ShapeDtypeStruct((nc, hw), x.dtype),
        grid_spec=pltpu.PrefetchScalarGridSpec(
            num_scalar_prefetch=0,
            grid=grid,
            in_specs=[pl.BlockSpec((rows, thw), lambda i, k: (i, k)),
                      pl.BlockSpec((rows, 1), lambda i, k: (i, 0))],
            out_specs=pl.BlockSpec((rows, thw), lambda i, k: (i, k)),
        ),
        compiler_params=pltpu.CompilerParams(
            dimension_semantics=("parallel", "parallel"),
            vmem_limit_bytes=_VMEM_LIMIT,
        ),
        cost_estimate=pl.CostEstimate(
            flops=nc * hw,
            transcendentals=0,
            bytes_accessed=2 * nc * hw * itemsize,
        ),
    )(x2d, scale)
    return out2d.reshape(n, c, h, w)


def channel_attention_ref(x):
    """Pure-JAX reference mirroring the PyTorch module."""
    max_x = jnp.max(x, axis=(2, 3), keepdims=True)
    avg_x = jnp.mean(x, axis=(2, 3), keepdims=True)
    final_x = jax.nn.sigmoid(max_x + avg_x)
    return x * final_x


if __name__ == "__main__":
    key = jax.random.PRNGKey(0)

    # Small shape consistent with the module: batch=2, channels=4, spatial=16x16.
    x = jax.random.normal(key, (2, 4, 16, 16), dtype=jnp.float32)
    out = jax.block_until_ready(channel_attention(x))
    ref = channel_attention_ref(x)
    assert out.shape == x.shape and out.dtype == x.dtype
    assert jnp.allclose(out, ref, atol=1e-5, rtol=1e-5), "mismatch vs reference"

    # Non-128-multiple spatial size: handled with a full-dim (unpadded) block.
    x2 = jax.random.normal(jax.random.PRNGKey(1), (2, 16, 14, 14), dtype=jnp.float32)
    out2 = jax.block_until_ready(channel_attention(x2))
    ref2 = channel_attention_ref(x2)
    assert jnp.allclose(out2, ref2, atol=1e-5, rtol=1e-5), "mismatch vs reference (ragged hw)"

    # Force the two-pass spatial-split fallback (large-H*W path) on a small
    # shape so its masked-tail reduction is exercised and checked.
    out3 = jax.block_until_ready(channel_attention(x2, force_split=True, tile_hw=128))
    assert jnp.allclose(out3, ref2, atol=1e-5, rtol=1e-5), "mismatch vs reference (split path)"

    print("KERNEL_OK")
</pallas_src>

<mosaic_0001>
module attributes {stable_mosaic.version = 11 : i64} {
  func.func @_ca_fused_kernel(%arg0: i32, %arg1: memref<8x256xf32, #tpu.memory_space<vmem>>, %arg2: memref<8x256xf32, #tpu.memory_space<vmem>>) attributes {dimension_semantics = [#tpu.dimension_semantics<parallel>], iteration_bounds = array<i64: 1>, scalar_prefetch = 0 : i64, scratch_operands = 0 : i64, tpu.core_type = #tpu.core_type<tc>, window_params = [{transform_indices = @transform_0, window_bounds = array<i64: 8, 256>}, {transform_indices = @transform_1, window_bounds = array<i64: 8, 256>}]} {
    %c0 = arith.constant 0 : index
    %c0_0 = arith.constant 0 : index
    %0 = vector.load %arg1[%c0, %c0_0] : memref<8x256xf32, #tpu.memory_space<vmem>>, vector<8x256xf32>
    %cst = arith.constant dense<0xFF800000> : vector<8xf32>
    %1 = vector.multi_reduction <maximumf>, %0, %cst [1] : vector<8x256xf32> to vector<8xf32>
    %2 = vector.shape_cast %1 : vector<8xf32> to vector<8x1xf32>
    %cst_1 = arith.constant dense<0.000000e+00> : vector<8xf32>
    %3 = vector.multi_reduction <add>, %0, %cst_1 [1] : vector<8x256xf32> to vector<8xf32>
    %4 = vector.shape_cast %3 : vector<8xf32> to vector<8x1xf32>
    %cst_2 = arith.constant 3.906250e-03 : f32
    %5 = vector.broadcast %cst_2 : f32 to vector<8x1xf32>
    %6 = arith.mulf %4, %5 : vector<8x1xf32>
    %7 = arith.addf %2, %6 : vector<8x1xf32>
    %8 = arith.negf %7 : vector<8x1xf32>
    %9 = math.exp %8 : vector<8x1xf32>
    %cst_3 = arith.constant 1.000000e+00 : f32
    %10 = vector.broadcast %cst_3 : f32 to vector<8x1xf32>
    %11 = arith.addf %10, %9 : vector<8x1xf32>
    %12 = arith.divf %10, %11 : vector<8x1xf32>
    %13 = vector.broadcast %12 : vector<8x1xf32> to vector<8x256xf32>
    %14 = arith.mulf %0, %13 : vector<8x256xf32>
    %c0_4 = arith.constant 0 : index
    %c0_5 = arith.constant 0 : index
    %15 = vector.load %arg2[%c0_4, %c0_5] : memref<8x256xf32, #tpu.memory_space<vmem>>, vector<8x256xf32>
    tpu.vector_store %arg2[%c0_4, %c0_5], %14 {strides = array<i32>} : memref<8x256xf32, #tpu.memory_space<vmem>>, vector<8x256xf32>,
    return
  }
  func.func @transform_0(%arg0: i32) -> (i32, i32) {
    %c0_i32 = arith.constant 0 : i32
    %c0_i32_0 = arith.constant 0 : i32
    return %arg0, %c0_i32 : i32, i32
  }
  func.func @transform_1(%arg0: i32) -> (i32, i32) {
    %c0_i32 = arith.constant 0 : i32
    %c0_i32_0 = arith.constant 0 : i32
    return %arg0, %c0_i32 : i32, i32
  }
}

</mosaic_0001>

<llo_original>
// kernel: channel_attention.1
$region0: #{channel_attention.1}
  #allocation0 [shape = 'u32[]', space=smem, size = 0x4, offset = 0x4, fixed_abs, tag = 'smem constant byte address 0x4 - core index']
  #allocation1 [shape = 'u32[144,128]{1,0:T(1,128)}', space=vmem, size = 0x12000, scoped, tag = 'internal scratch']
  %s0 = inlined_call_operand.vmem [shape: f32[8,256], index: 0, kind: input, shape index: {}]
  %s1 = inlined_call_operand.vmem [shape: f32[8,256], index: 1, kind: output, shape index: {}]
  %s2 = sld [smem:[#allocation0]]
  $region14: #{channel_attention.1} parent=0
    _
  %s4 = ssub.s32 1, %s2
  %s5 = scalar_select 0, %s4, %s2
  // Predicated region
  $region2: #{channel_attention.1} parent=0 // pred_check
    _
  $region3: #{channel_attention.1} parent=0 // pred_check_branch
    %7 = sbr.rel (0) target = $region5
  $region4: #{channel_attention.1} parent=0 // pred_region
    _
  $region5: #{channel_attention.1} parent=0 // pred_fallthru
    _
  %v8 = vld [vmem:[%s0] sm:$0xff]
  %v9 = vld [vmem:[%s0 + $0x8] sm:$0xff]
  %v10 = vmax.f32 %v8, %v9
  %11 = vmax.xlane.f32.xlu0 %v10
  %v12 = vpop.xlane.xlu0 %11
  %v13 = vadd.f32 %v8, %v9
  %14 = vadd.xlane.f32.xlu0 %v13
  %v15 = vpop.xlane.xlu0 %14
  %v16 = vmul.f32 %v15, 0.00390625
  %v17 = vadd.f32 %v12, %v16
  %v18 = vxor.u32 %v17, 2147483648
  %v19 = vmul.f32 %v18, 1.442695
  %v20 = vpow.pop %v19
  %v21 = vadd.f32 %v20, 1.0
  %v22 = vrcp.pop %v21
  %v23 = vmul.f32 1.0, %v22
  %v24 = vmul.f32 %v8, %v23
  %v25 = vmul.f32 %v9, %v23
  %26 = vst [vmem:[%s1] sm:$0xff] %v24
  %27 = vst [vmem:[%s1 + $0x8] sm:$0xff] %v25
  // Predicated region
  $region6: #{channel_attention.1} parent=0 // pred_check
    _
  $region7: #{channel_attention.1} parent=0 // pred_check_branch
    %29 = sbr.rel (0) target = $region9
  $region8: #{channel_attention.1} parent=0 // pred_region
    _
  $region9: #{channel_attention.1} parent=0 // pred_fallthru
    _
  // Predicated region
  $region10: #{channel_attention.1} parent=0 // pred_check
    _
  $region11: #{channel_attention.1} parent=0 // pred_check_branch
    %31 = sbr.rel (0) target = $region13
  $region12: #{channel_attention.1} parent=0 // pred_region
    _
  $region13: #{channel_attention.1} parent=0 // pred_fallthru
    _

</llo_original>
